<compile_context>
chip_gen: v7x
topology: tpu7x:2x2x1
jax: 0.10.0
libtpu: 0.0.40
codegen_flags: <defaults>
</compile_context>

<pallas_src>
import jax
import jax.numpy as jnp
from jax import lax
from jax.experimental import pallas as pl
from jax.experimental.pallas import tpu as pltpu


# ----------------------------- Pallas kernel -------------------------------

def _minmax_scale(x):
    """scale_cam_image normalization: (x - min) / (1e-7 + max)."""
    x = x - jnp.min(x, keepdims=True)
    return x * pl.reciprocal(1e-7 + jnp.max(x, keepdims=True), approx=True)


def _cam_accumulate(act_ref, grad_ref, acc_ref):
    """Accumulate one channel chunk of the weighted-activation sum."""
    @pl.when(pl.program_id(1) == 0)
    def _init():
        acc_ref[...] = jnp.zeros_like(acc_ref)

    acts = act_ref[0].astype(jnp.float32)    # (c_blk, Hf*Wf)
    grads = grad_ref[0].astype(jnp.float32)  # (c_blk, Hf*Wf)
    # weights = np.mean(grads, axis=(2, 3))  (per-channel spatial mean)
    weights = jnp.mean(grads, axis=-1, keepdims=True)            # (c_blk, 1)
    # weighted_activations.sum(axis=1) as a (1,c_blk)x(c_blk,HW) contraction on
    # the MXU with an f32 accumulator (no (C,H,W) f32 temporary in vregs).
    acc_ref[...] += lax.dot_general(
        weights, acts,
        dimension_numbers=(((0,), (0,)), ((), ())),
        preferred_element_type=jnp.float32)                      # (1, Hf*Wf)


def _cam_finalize(acc_ref, rt_ref, out_ref):
    """ReLU + normalize + (optional) bilinear resize + normalize + store."""
    @pl.when(pl.program_id(1) == pl.num_programs(1) - 1)
    def _fin():
        cam = jnp.maximum(acc_ref[...], 0.0)       # np.maximum(cam, 0)
        cam = _minmax_scale(cam)                   # scale_cam_image (pre-resize)
        if rt_ref is not None:
            # Bilinear resize fused as one matmul against kron(Rh, Rw)^T.
            cam = lax.dot_general(
                cam, rt_ref[...],
                dimension_numbers=(((1,), (0,)), ((), ())),
                preferred_element_type=jnp.float32)              # (1, Ho*Wo)
        cam = _minmax_scale(cam)                   # final scale_cam_image
        out_ref[0] = cam


def _cam_resize_kernel(act_ref, grad_ref, rt_ref, out_ref, acc_ref):
    _cam_accumulate(act_ref, grad_ref, acc_ref)
    _cam_finalize(acc_ref, rt_ref, out_ref)


def _cam_noresize_kernel(act_ref, grad_ref, out_ref, acc_ref):
    _cam_accumulate(act_ref, grad_ref, acc_ref)
    _cam_finalize(acc_ref, None, out_ref)


# ------------------------------ wrapper helpers -----------------------------

def _bilinear_matrix(n_out, n_in):
    """1-D bilinear interpolation matrix (cv2 INTER_LINEAR half-pixel centers)."""
    if n_out == n_in:
        return jnp.eye(n_in, dtype=jnp.float32)
    # TODO(synk): cv2.resize border handling for strong downsampling can differ
    # marginally; upsampling (the GradCAM case) matches this matrix.
    src = (jnp.arange(n_out, dtype=jnp.float32) + 0.5) * (n_in / n_out) - 0.5
    src = jnp.clip(src, 0.0, n_in - 1)
    i0 = jnp.floor(src).astype(jnp.int32)
    i1 = jnp.minimum(i0 + 1, n_in - 1)
    w1 = src - i0.astype(jnp.float32)
    rows = jnp.arange(n_out)
    m = jnp.zeros((n_out, n_in), jnp.float32)
    m = m.at[rows, i0].add(1.0 - w1)
    m = m.at[rows, i1].add(w1)
    return m


def _pick_c_block(c, hwf, budget_bytes=8 * 1024 * 1024):
    """Largest channel chunk (multiple of 8 dividing C, or C) within VMEM budget."""
    per_chan = 4 * 4 * hwf  # acts + grads, double-buffered, f32 bytes
    if c * per_chan <= budget_bytes:
        return c
    best = None
    for cb in range(8, c, 8):
        if c % cb == 0 and cb * per_chan <= budget_bytes:
            best = cb
    return best if best is not None else c


def gradcam_cam(activations, grads, target_size=None):
    """Fused GradCAM: weights, weighted sum, ReLU, normalize, resize, normalize."""
    n, c, hf, wf = activations.shape
    ho, wo = target_size if target_size is not None else (hf, wf)
    hwf, hwo = hf * wf, ho * wo
    do_resize = (ho, wo) != (hf, wf)

    # Lane-dense layout (free reshape for contiguous NCHW).  bf16 inputs are
    # also supported: the kernel casts and accumulates in f32.
    acts2 = activations.reshape(n, c, hwf)
    grads2 = grads.reshape(n, c, hwf)

    c_blk = _pick_c_block(c, hwf)
    grid = (n, c // c_blk)

    in_specs = [pl.BlockSpec((1, c_blk, hwf), lambda ni, ci: (ni, ci, 0)),
                pl.BlockSpec((1, c_blk, hwf), lambda ni, ci: (ni, ci, 0))]
    operands = [acts2, grads2]
    if do_resize:
        rt = jnp.kron(_bilinear_matrix(ho, hf), _bilinear_matrix(wo, wf)).T
        in_specs.append(pl.BlockSpec((hwf, hwo), lambda ni, ci: (0, 0)))
        operands.append(rt)
        kernel = _cam_resize_kernel
    else:
        kernel = _cam_noresize_kernel

    block_bytes = 4 * (4 * c_blk * hwf + hwf * hwo + 2 * hwo + hwf)
    vmem_limit = int(min(64 * 1024 * 1024, max(32 * 1024 * 1024, 2 * block_bytes)))

    out = pl.pallas_call(
        kernel,
        out_shape=jax.ShapeDtypeStruct((n, 1, hwo), jnp.float32),
        grid=grid,
        in_specs=in_specs,
        out_specs=pl.BlockSpec((1, 1, hwo), lambda ni, ci: (ni, 0, 0)),
        scratch_shapes=[pltpu.VMEM((1, hwf), jnp.float32)],
        compiler_params=pltpu.CompilerParams(
            dimension_semantics=("parallel", "arbitrary"),
            vmem_limit_bytes=vmem_limit),
    )(*operands)
    return out.reshape(n, ho, wo)


# --------------------- synthetic base model (plain JAX glue) ----------------

def init_params(key, c_in=3, c_feat=8, num_classes=2):
    k1, k2 = jax.random.split(key, 2)
    return dict(
        conv_w=0.1 * jax.random.normal(k1, (c_feat, c_in, 3, 3), jnp.float32),
        conv_b=jnp.zeros((c_feat,), jnp.float32),
        fc_w=0.1 * jax.random.normal(k2, (c_feat, num_classes), jnp.float32),
        fc_b=jnp.zeros((num_classes,), jnp.float32),
    )


def target_layer(params, x):
    """The hooked conv layer (its output is the GradCAM 'activation')."""
    y = lax.conv_general_dilated(
        x, params["conv_w"], window_strides=(2, 2), padding="SAME",
        dimension_numbers=("NCHW", "OIHW", "NCHW"))
    return y + params["conv_b"][None, :, None, None]


def head(params, acts):
    """Rest of the base model: ReLU -> global average pool -> linear."""
    pooled = jnp.mean(jax.nn.relu(acts), axis=(2, 3))     # (N, C_feat)
    return pooled @ params["fc_w"] + params["fc_b"]       # (N, num_classes)


# ------------------------------ GradCAM forward -----------------------------

def gradcam_forward(params, x, flip=False):
    # forward hook: capture target-layer activations
    acts = target_layer(params, x)
    logits, vjp_fn = jax.vjp(lambda a: head(params, a), acts)

    # torch: _, predicted = torch.max(outputs.data, 1); pred = predicted.item()
    # .item() implies batch==1 in the original; per-image argmax is the faithful
    # generalization (identical for N == 1).
    pred = jnp.argmax(logits, axis=1)
    if flip:
        pred = 1 - pred

    # outputs[:, pred].backward() -> gradient hook captures d out[:, pred]/d acts
    cotangent = jax.nn.one_hot(pred, logits.shape[1], dtype=logits.dtype)
    (grads,) = vjp_fn(cotangent)

    # Pallas hot path: CAM weights + weighted sum + ReLU + normalize + resize
    # (scale_cam_image with target_size) + final normalize — one kernel.
    target_size = (x.shape[-2], x.shape[-1])
    return gradcam_cam(acts, grads, target_size=target_size)


# ------------------------------ pure-JAX reference --------------------------

def gradcam_reference(acts, grads, h_out, w_out):
    hp = lax.Precision.HIGHEST
    _, _, hf, wf = acts.shape
    w = jnp.mean(grads, axis=(2, 3))
    cam = jnp.einsum("nc,nchw->nhw", w, acts, precision=hp)
    cam = jnp.maximum(cam, 0.0)
    cam = cam - cam.min(axis=(1, 2), keepdims=True)
    cam = cam / (1e-7 + cam.max(axis=(1, 2), keepdims=True))
    rh = _bilinear_matrix(h_out, hf)
    rw = _bilinear_matrix(w_out, wf)
    cam = jnp.einsum("oh,nhw,pw->nop", rh, cam, rw, precision=hp)
    cam = cam - cam.min(axis=(1, 2), keepdims=True)
    cam = cam / (1e-7 + cam.max(axis=(1, 2), keepdims=True))
    return cam


if __name__ == "__main__":
    key = jax.random.PRNGKey(0)
    kp, kx = jax.random.split(key)

    # batch=2, 3 input channels, 16x16 spatial; stride-2 conv -> 8x8 feature
    # map with 8 channels, CAM upsampled back to 16x16 inside the kernel.
    N, C_IN, H, W = 2, 3, 16, 16
    params = init_params(kp, c_in=C_IN, c_feat=8, num_classes=2)
    x = jax.random.normal(kx, (N, C_IN, H, W), jnp.float32)

    cam = jax.block_until_ready(gradcam_forward(params, x, flip=False))

    # reference check (same glue, pure-JAX CAM math)
    acts = target_layer(params, x)
    logits, vjp_fn = jax.vjp(lambda a: head(params, a), acts)
    cot = jax.nn.one_hot(jnp.argmax(logits, axis=1), logits.shape[1],
                         dtype=logits.dtype)
    (grads,) = vjp_fn(cot)
    ref = gradcam_reference(acts, grads, H, W)

    assert cam.shape == (N, H, W)
    assert bool(jnp.all(jnp.isfinite(cam)))
    assert float(jnp.min(cam)) >= 0.0 and float(jnp.max(cam)) <= 1.0 + 1e-2
    assert float(jnp.max(jnp.abs(cam - ref))) < 2e-2
    print("KERNEL_OK")
</pallas_src>

<mosaic_0001>
module attributes {stable_mosaic.version = 11 : i64} {
  func.func @_cam_resize_kernel(%arg0: i32, %arg1: i32, %arg2: memref<1x8x64xf32, #tpu.memory_space<vmem>>, %arg3: memref<1x8x64xf32, #tpu.memory_space<vmem>>, %arg4: memref<64x256xf32, #tpu.memory_space<vmem>>, %arg5: memref<1x1x256xf32, #tpu.memory_space<vmem>>, %arg6: memref<1x64xf32, #tpu.memory_space<vmem>>) attributes {dimension_semantics = [#tpu.dimension_semantics<parallel>, #tpu.dimension_semantics<arbitrary>], iteration_bounds = array<i64: 2, 1>, scalar_prefetch = 0 : i64, scratch_operands = 1 : i64, tpu.core_type = #tpu.core_type<tc>, window_params = [{transform_indices = @transform_0, window_bounds = array<i64: 1, 8, 64>}, {transform_indices = @transform_1, window_bounds = array<i64: 1, 8, 64>}, {pipeline_mode = #tpu.pipeline_mode<synchronous>, transform_indices = @transform_2, window_bounds = array<i64: 64, 256>}, {transform_indices = @transform_3, window_bounds = array<i64: 1, 1, 256>}]} {
    %c0_i32 = arith.constant 0 : i32
    %0 = arith.cmpi eq, %arg1, %c0_i32 : i32
    %1 = arith.extui %0 : i1 to i32
    %c0_i32_0 = arith.constant 0 : i32
    %2 = arith.cmpi ne, %1, %c0_i32_0 : i32
    scf.if %2 {
      %cst_14 = arith.constant 0.000000e+00 : f32
      %18 = vector.broadcast %cst_14 : f32 to vector<1x64xf32>
      %c0_15 = arith.constant 0 : index
      %c0_16 = arith.constant 0 : index
      %19 = vector.load %arg6[%c0_15, %c0_16] : memref<1x64xf32, #tpu.memory_space<vmem>>, vector<1x64xf32>
      tpu.vector_store %arg6[%c0_15, %c0_16], %18 {strides = array<i32>} : memref<1x64xf32, #tpu.memory_space<vmem>>, vector<1x64xf32>,
    } else {
    }
    %c0 = arith.constant 0 : index
    %c0_1 = arith.constant 0 : index
    %c0_2 = arith.constant 0 : index
    %3 = vector.load %arg2[%c0, %c0_1, %c0_2] : memref<1x8x64xf32, #tpu.memory_space<vmem>>, vector<1x8x64xf32>
    %4 = vector.shape_cast %3 : vector<1x8x64xf32> to vector<8x64xf32>
    %c0_3 = arith.constant 0 : index
    %c0_4 = arith.constant 0 : index
    %c0_5 = arith.constant 0 : index
    %5 = vector.load %arg3[%c0_3, %c0_4, %c0_5] : memref<1x8x64xf32, #tpu.memory_space<vmem>>, vector<1x8x64xf32>
    %6 = vector.shape_cast %5 : vector<1x8x64xf32> to vector<8x64xf32>
    %cst = arith.constant dense<0.000000e+00> : vector<8xf32>
    %7 = vector.multi_reduction <add>, %6, %cst [1] : vector<8x64xf32> to vector<8xf32>
    %8 = vector.shape_cast %7 : vector<8xf32> to vector<8x1xf32>
    %cst_6 = arith.constant 6.400000e+01 : f32
    %9 = vector.broadcast %cst_6 : f32 to vector<8x1xf32>
    %10 = arith.divf %8, %9 : vector<8x1xf32>
    %c0_7 = arith.constant 0 : index
    %c0_8 = arith.constant 0 : index
    %11 = vector.load %arg6[%c0_7, %c0_8] : memref<1x64xf32, #tpu.memory_space<vmem>>, vector<1x64xf32>
    %cst_9 = arith.constant dense<0.000000e+00> : vector<1x64xf32>
    %12 = tpu.matmul %10, %4, %cst_9 {dimension_numbers = #tpu.dot_dimension_numbers<[0], [0], [1], [1], [0, 1, 1, 1], [], []>} : vector<8x1xf32>, vector<8x64xf32>, vector<1x64xf32> -> vector<1x64xf32>
    %13 = arith.addf %11, %12 : vector<1x64xf32>
    %c0_10 = arith.constant 0 : index
    %c0_11 = arith.constant 0 : index
    %14 = vector.load %arg6[%c0_10, %c0_11] : memref<1x64xf32, #tpu.memory_space<vmem>>, vector<1x64xf32>
    tpu.vector_store %arg6[%c0_10, %c0_11], %13 {strides = array<i32>} : memref<1x64xf32, #tpu.memory_space<vmem>>, vector<1x64xf32>,
    %c0_i32_12 = arith.constant 0 : i32
    %15 = arith.cmpi eq, %arg1, %c0_i32_12 : i32
    %16 = arith.extui %15 : i1 to i32
    %c0_i32_13 = arith.constant 0 : i32
    %17 = arith.cmpi ne, %16, %c0_i32_13 : i32
    scf.if %17 {
      %c0_14 = arith.constant 0 : index
      %c0_15 = arith.constant 0 : index
      %18 = vector.load %arg6[%c0_14, %c0_15] : memref<1x64xf32, #tpu.memory_space<vmem>>, vector<1x64xf32>
      %cst_16 = arith.constant 0.000000e+00 : f32
      %19 = vector.broadcast %cst_16 : f32 to vector<1x64xf32>
      %20 = arith.maximumf %18, %19 : vector<1x64xf32>
      %21 = vector.shape_cast %20 : vector<1x64xf32> to vector<1x1x64xf32>
      %cst_17 = arith.constant dense<0x7F800000> : vector<1xf32>
      %22 = vector.multi_reduction <minimumf>, %21, %cst_17 [1, 2] : vector<1x1x64xf32> to vector<1xf32>
      %23 = vector.shape_cast %22 : vector<1xf32> to vector<1x1x1xf32>
      %24 = vector.extract %23[0, 0, 0] : f32 from vector<1x1x1xf32>
      %25 = vector.broadcast %24 : f32 to vector<1x1xf32>
      %26 = vector.broadcast %25 : vector<1x1xf32> to vector<1x64xf32>
      %27 = arith.subf %20, %26 : vector<1x64xf32>
      %28 = vector.shape_cast %27 : vector<1x64xf32> to vector<1x1x64xf32>
      %cst_18 = arith.constant dense<0xFF800000> : vector<1xf32>
      %29 = vector.multi_reduction <maximumf>, %28, %cst_18 [1, 2] : vector<1x1x64xf32> to vector<1xf32>
      %30 = vector.shape_cast %29 : vector<1xf32> to vector<1x1x1xf32>
      %31 = vector.extract %30[0, 0, 0] : f32 from vector<1x1x1xf32>
      %32 = vector.broadcast %31 : f32 to vector<1x1xf32>
      %cst_19 = arith.constant 1.000000e-07 : f32
      %33 = vector.broadcast %cst_19 : f32 to vector<1x1xf32>
      %34 = arith.addf %33, %32 : vector<1x1xf32>
      %35 = tpu.reciprocal %34 {approx = true} : vector<1x1xf32> -> vector<1x1xf32>
      %36 = vector.broadcast %35 : vector<1x1xf32> to vector<1x64xf32>
      %37 = arith.mulf %27, %36 : vector<1x64xf32>
      %c0_20 = arith.constant 0 : index
      %c0_21 = arith.constant 0 : index
      %38 = vector.load %arg4[%c0_20, %c0_21] : memref<64x256xf32, #tpu.memory_space<vmem>>, vector<64x256xf32>
      %cst_22 = arith.constant dense<0.000000e+00> : vector<1x256xf32>
      %39 = tpu.matmul %37, %38, %cst_22 {dimension_numbers = #tpu.dot_dimension_numbers<[1], [0], [0], [1], [0, 0, 1, 1], [], []>} : vector<1x64xf32>, vector<64x256xf32>, vector<1x256xf32> -> vector<1x256xf32>
      %40 = vector.shape_cast %39 : vector<1x256xf32> to vector<1x1x256xf32>
      %cst_23 = arith.constant dense<0x7F800000> : vector<1xf32>
      %41 = vector.multi_reduction <minimumf>, %40, %cst_23 [1, 2] : vector<1x1x256xf32> to vector<1xf32>
      %42 = vector.shape_cast %41 : vector<1xf32> to vector<1x1x1xf32>
      %43 = vector.extract %42[0, 0, 0] : f32 from vector<1x1x1xf32>
      %44 = vector.broadcast %43 : f32 to vector<1x1xf32>
      %45 = vector.broadcast %44 : vector<1x1xf32> to vector<1x256xf32>
      %46 = arith.subf %39, %45 : vector<1x256xf32>
      %47 = vector.shape_cast %46 : vector<1x256xf32> to vector<1x1x256xf32>
      %cst_24 = arith.constant dense<0xFF800000> : vector<1xf32>
      %48 = vector.multi_reduction <maximumf>, %47, %cst_24 [1, 2] : vector<1x1x256xf32> to vector<1xf32>
      %49 = vector.shape_cast %48 : vector<1xf32> to vector<1x1x1xf32>
      %50 = vector.extract %49[0, 0, 0] : f32 from vector<1x1x1xf32>
      %51 = vector.broadcast %50 : f32 to vector<1x1xf32>
      %cst_25 = arith.constant 1.000000e-07 : f32
      %52 = vector.broadcast %cst_25 : f32 to vector<1x1xf32>
      %53 = arith.addf %52, %51 : vector<1x1xf32>
      %54 = tpu.reciprocal %53 {approx = true} : vector<1x1xf32> -> vector<1x1xf32>
      %55 = vector.broadcast %54 : vector<1x1xf32> to vector<1x256xf32>
      %56 = arith.mulf %46, %55 : vector<1x256xf32>
      %c0_26 = arith.constant 0 : index
      %c0_27 = arith.constant 0 : index
      %c0_28 = arith.constant 0 : index
      %57 = vector.load %arg5[%c0_26, %c0_27, %c0_28] : memref<1x1x256xf32, #tpu.memory_space<vmem>>, vector<1x1x256xf32>
      %58 = vector.shape_cast %57 : vector<1x1x256xf32> to vector<1x256xf32>
      %59 = vector.shape_cast %56 : vector<1x256xf32> to vector<1x1x256xf32>
      tpu.vector_store %arg5[%c0_26, %c0_27, %c0_28], %59 {strides = array<i32>} : memref<1x1x256xf32, #tpu.memory_space<vmem>>, vector<1x1x256xf32>,
    } else {
    }
    return
  }
  func.func @transform_0(%arg0: i32, %arg1: i32) -> (i32, i32, i32) {
    %c0_i32 = arith.constant 0 : i32
    %c0_i32_0 = arith.constant 0 : i32
    return %arg0, %arg1, %c0_i32 : i32, i32, i32
  }
  func.func @transform_1(%arg0: i32, %arg1: i32) -> (i32, i32, i32) {
    %c0_i32 = arith.constant 0 : i32
    %c0_i32_0 = arith.constant 0 : i32
    return %arg0, %arg1, %c0_i32 : i32, i32, i32
  }
  func.func @transform_2(%arg0: i32, %arg1: i32) -> (i32, i32) {
    %c0_i32 = arith.constant 0 : i32
    %c0_i32_0 = arith.constant 0 : i32
    %c0_i32_1 = arith.constant 0 : i32
    return %c0_i32, %c0_i32_0 : i32, i32
  }
  func.func @transform_3(%arg0: i32, %arg1: i32) -> (i32, i32, i32) {
    %c0_i32 = arith.constant 0 : i32
    %c0_i32_0 = arith.constant 0 : i32
    %c0_i32_1 = arith.constant 0 : i32
    return %arg0, %c0_i32, %c0_i32_0 : i32, i32, i32
  }
}

</mosaic_0001>

<llo_original>
// kernel: tpu_custom_call.1
$region0: #{tpu_custom_call.1}
  #allocation0 [shape = 'u32[]', space=smem, size = 0x4, offset = 0x4, fixed_abs, tag = 'smem constant byte address 0x4 - core index']
  #allocation1 [shape = 'u32[144,128]{1,0:T(1,128)}', space=vmem, size = 0x12000, scoped, tag = 'internal scratch']
  #allocation2 [shape = 'f32[1,64]{1,0:T(1,128)}', space=vmem, size = 0x200, scoped, tag = 'scratch operand']
  %s0 = inlined_call_operand.hbm [shape: f32[2,8,64], index: 0, kind: input, shape index: {}]
  %s1 = inlined_call_operand.hbm [shape: f32[2,8,64], index: 1, kind: input, shape index: {}]
  %s2 = inlined_call_operand.hbm [shape: f32[64,256], index: 2, kind: input, shape index: {}]
  %s3 = inlined_call_operand.hbm [shape: f32[2,1,256], index: 3, kind: output, shape index: {}]
  %s4 = sld [smem:[#allocation0]]
  $region65: #{tpu_custom_call.1} parent=0
    _
  %s6 = ssub.s32 1, %s4
  %s7 = scalar_select 0, %s6, %s4
  $region1: #{tpu_custom_call.1} parent=0
    #allocation3 [shape = 'u8[8192]{0}', space=vmem, size = 0x2000, scoped, tag = 'input window, operand 0']
    #allocation4 [shape = 's32[2]{0}', space=sflag, size = 0x8, scoped, tag = 'scoped memory for tpu_custom_call.1']
    #allocation5 [shape = 's32[2]{0}', space=sflag, size = 0x8, scoped, tag = 'scoped memory for tpu_custom_call.1']
    #allocation6 [shape = 'u8[8192]{0}', space=vmem, size = 0x2000, scoped, tag = 'input window, operand 1']
    #allocation7 [shape = 's32[2]{0}', space=sflag, size = 0x8, scoped, tag = 'scoped memory for tpu_custom_call.1']
    #allocation8 [shape = 'u8[65536]{0}', space=vmem, size = 0x10000, scoped, tag = 'input window, operand 2, single buffered']
    #allocation9 [shape = 'u8[2048]{0}', space=vmem, size = 0x800, scoped, tag = 'output window, operand 0']
    %8 = vsyncpa [#allocation4], 0
    %s9 = scalar_lea.sflag [#allocation4], 1
    %10 = vsyncpa %s9, 0
    %11 = vsyncpa [#allocation7], 0
    %s12 = scalar_lea.sflag [#allocation7], 1
    %13 = vsyncpa %s12, 0
    %14 = vsyncpa [#allocation5], 0
    %s15 = scalar_lea.sflag [#allocation5], 1
    %16 = vsyncpa %s15, 0
    loop: start=0, step=1, limit=4
    $region2: #{tpu_custom_call.1} parent=1 // loop_pre_header
      _
    $region3: #{tpu_custom_call.1} parent=1 // loop_header
      %s18 = sphi 0, %s22
      %p19 = scmp.ge.s32.totalorder %s18, 4
      %s25 = sphi 0, %s37
      %s26 = sphi 0, %s33
      %s27 = sphi 0, %s25
      %s28 = sphi 0, %s26
      %s29 = sphi 0, %s27
      %s30 = sphi 0, %s28
      %s42 = sphi 0, %s44
      %s45 = sphi 0, %s42
      %s46 = sphi 0, %s45
      %s62 = sphi 0, %s46
      %s70 = sphi 0, %s72
      %s73 = sphi 0, %s70
      %s74 = sphi 0, %s73
      %s90 = sphi 0, %s74
      %s94 = sphi 0, %s94
      %s96 = sphi 0, %s94
      %s97 = sphi 0, %s96
      %s111 = sphi 0, %s97
      %s117 = sphi 0, %s119
      %s120 = sphi 0, %s117
      %s121 = sphi 0, %s120
      %s137 = sphi 0, %s121
    $region4: #{tpu_custom_call.1} parent=1 // loop_header_branch
      %21 = sbr.rel (%p19) target = $region8
    $region5: #{tpu_custom_call.1} parent=1 // loop_body
      %s23 = ssub.s32 %s18, 1
      %s24 = ssub.s32 %s18, 2
      %s31 = sadd.s32 1, %s26
      %p32 = scmp.ge.s32.totalorder %s31, 1
      %s33 = scalar_select %p32, 0, %s31
      %s34 = sadd.s32 1, %s25
      %s35 = scalar_select %p32, %s34, %s25
      %p36 = scmp.ge.s32.totalorder %s35, 2
      %s37 = scalar_select %p36, 0, %s35
      %s38 = ssub.s32 %s25, %s37
      %s39 = ssub.s32 %s26, %s33
      %s40 = sor.u32 %s38, %s39
      %p41 = scmp.eq.s32.totalorder %s40, 0
      %s43 = sadd.s32 %s42, 1
      %s44 = scalar_select %p41, %s42, %s43
      %p47 = pneg %p41
      %p48 = scmp.eq.s32.totalorder %s18, 1
      %p49 = por %p47, %p48
      %p50 = scmp.ne.s32.totalorder %s42, %s45
      %p51 = scmp.eq.s32.totalorder %s18, 0
      %p52 = por %p50, %p51
      %p53 = scmp.ne.s32.totalorder %s42, %s45
      %p54 = scmp.eq.s32.totalorder %s23, 1
      %p55 = por %p53, %p54
      %p56 = scmp.ne.s32.totalorder %s45, %s46
      %p57 = scmp.eq.s32.totalorder %s23, 0
      %p58 = por %p56, %p57
      %p59 = scmp.ne.s32.totalorder %s45, %s46
      %p60 = scmp.eq.s32.totalorder %s24, 1
      %p61 = por %p59, %p60
      %p63 = scmp.ne.s32.totalorder %s46, %s62
      %p64 = scmp.eq.s32.totalorder %s24, 0
      %p65 = por %p63, %p64
      %s66 = ssub.s32 %s25, %s37
      %s67 = ssub.s32 %s26, %s33
      %s68 = sor.u32 %s66, %s67
      %p69 = scmp.eq.s32.totalorder %s68, 0
      %s71 = sadd.s32 %s70, 1
      %s72 = scalar_select %p69, %s70, %s71
      %p75 = pneg %p69
      %p76 = scmp.eq.s32.totalorder %s18, 1
      %p77 = por %p75, %p76
      %p78 = scmp.ne.s32.totalorder %s70, %s73
      %p79 = scmp.eq.s32.totalorder %s18, 0
      %p80 = por %p78, %p79
      %p81 = scmp.ne.s32.totalorder %s70, %s73
      %p82 = scmp.eq.s32.totalorder %s23, 1
      %p83 = por %p81, %p82
      %p84 = scmp.ne.s32.totalorder %s73, %s74
      %p85 = scmp.eq.s32.totalorder %s23, 0
      %p86 = por %p84, %p85
      %p87 = scmp.ne.s32.totalorder %s73, %s74
      %p88 = scmp.eq.s32.totalorder %s24, 1
      %p89 = por %p87, %p88
      %p91 = scmp.ne.s32.totalorder %s74, %s90
      %p92 = scmp.eq.s32.totalorder %s24, 0
      %p93 = por %p91, %p92
      %s95 = sadd.s32 %s94, 1
      %p98 = scmp.eq.s32.totalorder %s18, 1
      %p99 = scmp.ne.s32.totalorder %s94, %s96
      %p100 = scmp.eq.s32.totalorder %s18, 0
      %p101 = por %p99, %p100
      %p102 = scmp.ne.s32.totalorder %s94, %s96
      %p103 = scmp.eq.s32.totalorder %s23, 1
      %p104 = por %p102, %p103
      %p105 = scmp.ne.s32.totalorder %s96, %s97
      %p106 = scmp.eq.s32.totalorder %s23, 0
      %p107 = por %p105, %p106
      %p108 = scmp.ne.s32.totalorder %s96, %s97
      %p109 = scmp.eq.s32.totalorder %s24, 1
      %p110 = por %p108, %p109
      %p112 = scmp.ne.s32.totalorder %s97, %s111
      %p113 = scmp.eq.s32.totalorder %s24, 0
      %p114 = por %p112, %p113
      %s115 = ssub.s32 %s25, %s37
      %p116 = scmp.eq.s32.totalorder %s115, 0
      %s118 = sadd.s32 %s117, 1
      %s119 = scalar_select %p116, %s117, %s118
      %p122 = pneg %p116
      %p123 = scmp.eq.s32.totalorder %s18, 1
      %p124 = por %p122, %p123
      %p125 = scmp.ne.s32.totalorder %s117, %s120
      %p126 = scmp.eq.s32.totalorder %s18, 0
      %p127 = por %p125, %p126
      %p128 = scmp.ne.s32.totalorder %s117, %s120
      %p129 = scmp.eq.s32.totalorder %s23, 1
      %p130 = por %p128, %p129
      %p131 = scmp.ne.s32.totalorder %s120, %s121
      %p132 = scmp.eq.s32.totalorder %s23, 0
      %p133 = por %p131, %p132
      %p134 = scmp.ne.s32.totalorder %s120, %s121
      %p135 = scmp.eq.s32.totalorder %s24, 1
      %p136 = por %p134, %p135
      %p138 = scmp.ne.s32.totalorder %s121, %s137
      %p139 = scmp.eq.s32.totalorder %s24, 0
      %p140 = por %p138, %p139
      %p141 = scmp.le.s32.totalorder 1, %s18
      %p142 = scmp.lt.s32.totalorder %s18, 3
      %p143 = pnand %p141, %p142
      %p144 = pneg %p143
      // Predicated region
      $region9: #{tpu_custom_call.1} parent=5 // pred_check
        _
      $region10: #{tpu_custom_call.1} parent=5 // pred_check_branch
        %146 = sbr.rel (%p143) target = $region12
      $region11: #{tpu_custom_call.1} parent=5 // pred_region
        %s147 = ssub.s32 %s18, 1
        // Predicated region
        $region13: #{tpu_custom_call.1} parent=11 // pred_check
          %p148 = pneg %p107
        $region14: #{tpu_custom_call.1} parent=11 // pred_check_branch
          %150 = sbr.rel (%p148) target = $region16
        $region15: #{tpu_custom_call.1} parent=11 // pred_region
          %s152 = ssub.s32 2048, 2048
          %153 = vsyncadd [#allocation7], %s152
          %s154 = sshll.u32 [#allocation8], 4
          %s155 = int_to_ptr.vmem [resolvable:$true] %s154
          %160 = dma.hbm_to_vmem [thread:$0]  %s2, 2048, %s155, [#allocation7], 256, 256, 16
        $region16: #{tpu_custom_call.1} parent=11 // pred_fallthru
          _
      $region12: #{tpu_custom_call.1} parent=5 // pred_fallthru
        _
      %p161 = scmp.lt.s32.totalorder %s18, 2
      // Predicated region
      $region17: #{tpu_custom_call.1} parent=5 // pred_check
        %p162 = pneg %p161
      $region18: #{tpu_custom_call.1} parent=5 // pred_check_branch
        %164 = sbr.rel (%p162) target = $region20
      $region19: #{tpu_custom_call.1} parent=5 // pred_region
        // Predicated region
        $region21: #{tpu_custom_call.1} parent=19 // pred_check
          %p165 = pneg %p52
        $region22: #{tpu_custom_call.1} parent=19 // pred_check_branch
          %167 = sbr.rel (%p165) target = $region24
        $region23: #{tpu_custom_call.1} parent=19 // pred_region
          %s168 = sand.u32 %s42, 1
          %s169 = scalar_lea.sflag [#allocation4], %s168
          %s170 = sand.u32 %s42, 1
          %s171 = smul.addr %s170, 8
          %s172 = scalar_lea.vmem [#allocation3], %s171
          %s174 = ssub.s32 128, 128
          %175 = vsyncadd %s169, %s174
          %s176 = sadd.s32 %s26, %s25
          %s177 = smul.addr %s176, 128
          %s178 = scalar_lea.hbm %s0, %s177
          %s180 = sshll.u32 %s172, 4
          %s181 = int_to_ptr.vmem [resolvable:$true] %s180
          %183 = dma.hbm_to_vmem [thread:$0]  %s178, 128, %s181, %s169
        $region24: #{tpu_custom_call.1} parent=19 // pred_fallthru
          _
        // Predicated region
        $region25: #{tpu_custom_call.1} parent=19 // pred_check
          %p184 = pneg %p80
        $region26: #{tpu_custom_call.1} parent=19 // pred_check_branch
          %186 = sbr.rel (%p184) target = $region28
        $region27: #{tpu_custom_call.1} parent=19 // pred_region
          %s187 = sand.u32 %s18, 1
          %s188 = scalar_lea.sflag [#allocation7], %s187
          %s189 = sand.u32 %s70, 1
          %s190 = smul.addr %s189, 8
          %s191 = scalar_lea.vmem [#allocation6], %s190
          %s193 = ssub.s32 128, 128
          %194 = vsyncadd %s188, %s193
          %s195 = sadd.s32 %s26, %s25
          %s196 = smul.addr %s195, 128
          %s197 = scalar_lea.hbm %s1, %s196
          %s199 = sshll.u32 %s191, 4
          %s200 = int_to_ptr.vmem [resolvable:$true] %s199
          %202 = dma.hbm_to_vmem [thread:$0]  %s197, 128, %s200, %s188
        $region28: #{tpu_custom_call.1} parent=19 // pred_fallthru
          _
      $region20: #{tpu_custom_call.1} parent=5 // pred_fallthru
        _
      %p203 = scmp.le.s32.totalorder 1, %s18
      %p204 = scmp.lt.s32.totalorder %s18, 3
      %p205 = pnand %p203, %p204
      %p206 = pneg %p205
      // Predicated region
      $region29: #{tpu_custom_call.1} parent=5 // pred_check
        _
      $region30: #{tpu_custom_call.1} parent=5 // pred_check_branch
        %208 = sbr.rel (%p205) target = $region32
      $region31: #{tpu_custom_call.1} parent=5 // pred_region
        %s209 = ssub.s32 %s18, 1
        %s210 = sand.u32 %s45, 1
        %s211 = scalar_lea.sflag [#allocation4], %s210
        %s212 = sand.u32 %s45, 1
        %s213 = smul.addr %s212, 8
        %s214 = scalar_lea.vmem [#allocation3], %s213
        // Predicated region
        $region33: #{tpu_custom_call.1} parent=31 // pred_check
          %p215 = pneg %p58
        $region34: #{tpu_custom_call.1} parent=31 // pred_check_branch
          %217 = sbr.rel (%p215) target = $region36
        $region35: #{tpu_custom_call.1} parent=31 // pred_region
          %218 = dma.done %s211, 128
        $region36: #{tpu_custom_call.1} parent=31 // pred_fallthru
          _
        %s219 = sand.u32 %s23, 1
        %s220 = scalar_lea.sflag [#allocation7], %s219
        %s221 = sand.u32 %s73, 1
        %s222 = smul.addr %s221, 8
        %s223 = scalar_lea.vmem [#allocation6], %s222
        // Predicated region
        $region37: #{tpu_custom_call.1} parent=31 // pred_check
          %p224 = pneg %p86
        $region38: #{tpu_custom_call.1} parent=31 // pred_check_branch
          %226 = sbr.rel (%p224) target = $region40
        $region39: #{tpu_custom_call.1} parent=31 // pred_region
          %227 = dma.done %s220, 128
        $region40: #{tpu_custom_call.1} parent=31 // pred_fallthru
          _
        // Predicated region
        $region41: #{tpu_custom_call.1} parent=31 // pred_check
          %p228 = pneg %p107
        $region42: #{tpu_custom_call.1} parent=31 // pred_check_branch
          %230 = sbr.rel (%p228) target = $region44
        $region43: #{tpu_custom_call.1} parent=31 // pred_region
          %231 = dma.done [#allocation7], 2048
        $region44: #{tpu_custom_call.1} parent=31 // pred_fallthru
          _
        %s232 = sand.u32 %s45, 1
        %s233 = scalar_lea.sflag [#allocation4], %s232
        %s234 = sand.u32 %s45, 1
        %s235 = smul.addr %s234, 8
        %s236 = scalar_lea.vmem [#allocation3], %s235
        %p237 = pneg %p58
        %p238 = pneg %p55
        %s239 = sand.u32 %s23, 1
        %s240 = scalar_lea.sflag [#allocation7], %s239
        %s241 = sand.u32 %s73, 1
        %s242 = smul.addr %s241, 8
        %s243 = scalar_lea.vmem [#allocation6], %s242
        %p244 = pneg %p86
        %p245 = pneg %p83
        %p246 = pneg %p107
        %p247 = pneg %p104
        %p248 = pneg %p133
        %p249 = pneg %p130
        %s250 = sand.u32 %s120, 1
        %s251 = scalar_lea.sflag [#allocation5], %s250
        %s252 = sand.u32 %s120, 1
        %s253 = smul.addr %s252, 2
        %s254 = scalar_lea.vmem [#allocation9], %s253
        %p255 = scmp.eq.s32.totalorder %s28, 0
        // Predicated region
        $region45: #{tpu_custom_call.1} parent=31 // pred_check
          %p256 = pneg %p255
        $region46: #{tpu_custom_call.1} parent=31 // pred_check_branch
          %258 = sbr.rel (%p256) target = $region48
        $region47: #{tpu_custom_call.1} parent=31 // pred_region
          %vm259 = vcmask 516096
          %260 = vst.msk [vmem:[#allocation2] sm:$0x1] %vm259, 0.0
        $region48: #{tpu_custom_call.1} parent=31 // pred_fallthru
          _
        %v261 = vld [vmem:[%s214] sm:$0xff]
        %v262 = vld [vmem:[%s223] sm:$0xff]
        %vm263 = vcmask 523264
        %v264 = vsel %vm263, %v262, 0.0
        %265 = vadd.xlane.f32.xlu0 %v264
        %v266 = vpop.xlane.xlu0 %265
        %v267 = vrcp.pop 64.0
        %v268 = vmul.f32 %v266, %v267
        %v269 = vld [vmem:[#allocation2] sm:$0x1]
        %270 = vxpose.xlu0.b32.start [1/16] %v268, 128
        %271 = vxpose.xlu0.b32.cont [2/16] 0.0, 128
        %272 = vxpose.xlu0.b32.cont [3/16] 0.0, 128
        %273 = vxpose.xlu0.b32.cont [4/16] 0.0, 128
        %274 = vxpose.xlu0.b32.cont [5/16] 0.0, 128
        %275 = vxpose.xlu0.b32.cont [6/16] 0.0, 128
        %276 = vxpose.xlu0.b32.cont [7/16] 0.0, 128
        %277 = vxpose.xlu0.b32.cont [8/16] 0.0, 128
        %278 = vxpose.xlu0.b32.cont [9/16] 0.0, 128
        %279 = vxpose.xlu0.b32.cont [10/16] 0.0, 128
        %280 = vxpose.xlu0.b32.cont [11/16] 0.0, 128
        %281 = vxpose.xlu0.b32.cont [12/16] 0.0, 128
        %282 = vxpose.xlu0.b32.cont [13/16] 0.0, 128
        %283 = vxpose.xlu0.b32.cont [14/16] 0.0, 128
        %284 = vxpose.xlu0.b32.cont [15/16] 0.0, 128
        %285 = vxpose.xlu0.b32.end [16/16] 0.0, 128
        %v286 = vpop.trf.xlu0
        %v287 = vpop.trf.xlu0
        %v288 = vpop.trf.xlu0
        %v289 = vpop.trf.xlu0
        %v290 = vpop.trf.xlu0
        %v291 = vpop.trf.xlu0
        %v292 = vpop.trf.xlu0
        %v293 = vpop.trf.xlu0
        %v294 = vpop.trf.xlu0
        %v295 = vpop.trf.xlu0
        %v296 = vpop.trf.xlu0
        %v297 = vpop.trf.xlu0
        %v298 = vpop.trf.xlu0
        %v299 = vpop.trf.xlu0
        %v300 = vpop.trf.xlu0
        %v301 = vpop.trf.xlu0
        %vm302 = vcmask 64512
        %v304 = vsel %vm302, %v286, 0
        %306 = vmatprep.subr.mxu0 0.0
        %307 = vmatpush1.msra.mxu0 %v261
        %308 = vmatprep.subr.mxu0 0.0
        %309 = vmatpush1.msra.mxu0 0.0
        %310 = vmatprep.subr.mxu0 0.0
        %311 = vmatpush1.msra.mxu0 0.0
        %312 = vmatprep.subr.mxu0 0.0
        %313 = vmatpush1.msra.mxu0 0.0
        %314 = vmatprep.subr.mxu0 0.0
        %315 = vmatpush1.msra.mxu0 0.0
        %316 = vmatprep.subr.mxu0 0.0
        %317 = vmatpush1.msra.mxu0 0.0
        %318 = vmatprep.subr.mxu0 0.0
        %319 = vmatpush1.msra.mxu0 0.0
        %320 = vmatprep.subr.mxu0 0.0
        %321 = vmatpush1.msra.mxu0 0.0
        %322 = vmatprep.subr.mxu0 0.0
        %323 = vmatpush1.msra.mxu0 0.0
        %324 = vmatprep.subr.mxu0 0.0
        %325 = vmatpush1.msra.mxu0 0.0
        %326 = vmatprep.subr.mxu0 0.0
        %327 = vmatpush1.msra.mxu0 0.0
        %328 = vmatprep.subr.mxu0 0.0
        %329 = vmatpush1.msra.mxu0 0.0
        %330 = vmatprep.subr.mxu0 0.0
        %331 = vmatpush1.msra.mxu0 0.0
        %332 = vmatprep.subr.mxu0 0.0
        %333 = vmatpush1.msra.mxu0 0.0
        %334 = vmatprep.subr.mxu0 0.0
        %335 = vmatpush1.msra.mxu0 0.0
        %336 = vmatprep.subr.mxu0 0.0
        %337 = vmatpush1.msra.mxu0 0.0
        %338 = vmatprep.subr.mxu0 0.0
        %339 = vmatpush1.msra.mxu0 0.0
        %340 = vmatprep.subr.mxu0 0.0
        %341 = vmatpush1.msra.mxu0 0.0
        %342 = vmatprep.subr.mxu0 0.0
        %343 = vmatpush1.msra.mxu0 0.0
        %344 = vmatprep.subr.mxu0 0.0
        %345 = vmatpush1.msra.mxu0 0.0
        %346 = vmatprep.subr.mxu0 0.0
        %347 = vmatpush1.msra.mxu0 0.0
        %348 = vmatprep.subr.mxu0 0.0
        %349 = vmatpush1.msra.mxu0 0.0
        %350 = vmatprep.subr.mxu0 0.0
        %351 = vmatpush1.msra.mxu0 0.0
        %352 = vmatprep.subr.mxu0 0.0
        %353 = vmatpush1.msra.mxu0 0.0
        %354 = vmatprep.subr.mxu0 0.0
        %355 = vmatpush1.msra.mxu0 0.0
        %356 = vmatprep.subr.mxu0 0.0
        %357 = vmatpush1.msra.mxu0 0.0
        %358 = vmatprep.subr.mxu0 0.0
        %359 = vmatpush1.msra.mxu0 0.0
        %360 = vmatprep.subr.mxu0 0.0
        %361 = vmatpush1.msra.mxu0 0.0
        %362 = vmatprep.subr.mxu0 0.0
        %363 = vmatpush1.msra.mxu0 0.0
        %364 = vmatprep.subr.mxu0 0.0
        %365 = vmatpush1.msra.mxu0 0.0
        %366 = vmatprep.subr.mxu0 0.0
        %367 = vmatpush1.msra.mxu0 0.0
        %368 = vmatprep.subr.mxu0 0.0
        %369 = vmatpush1.msra.mxu0 0.0
        %370 = vmatprep.mubr.f32.mxu0 0.0
        %371 = vmatmul.mubr.f32.gmra.mrb[0].mxu0 %v304
        %v372 = vpop.f32.mrb[0].mxu0
        %v373 = vadd.f32 0.0, %v372
        %v374 = vpop.f32.mrb[0].mxu0
        %375 = vdwg.mxu0
        %v376 = vadd.f32 %v269, %v373
        %vm377 = vcmask 516096
        %378 = vst.msk [vmem:[#allocation2] sm:$0x1] %vm377, %v376
        // Predicated region
        $region49: #{tpu_custom_call.1} parent=31 // pred_check
          %p379 = pneg %p255
        $region50: #{tpu_custom_call.1} parent=31 // pred_check_branch
          %381 = sbr.rel (%p379) target = $region52
        $region51: #{tpu_custom_call.1} parent=31 // pred_region
          %v382 = vld [vmem:[#allocation2] sm:$0x1]
          %v383 = vmax.f32 %v382, 0.0
          %v384 = vsel %vm377, %v383, inf
          %385 = vmin.xlane.f32.xlu0 %v384
          %v386 = vpop.xlane.xlu0 %385
          %v387 = vrot.slane %v386, 4
          %v388 = vmin.f32 %v386, %v387
          %v389 = vrot.slane %v388, 2
          %v390 = vmin.f32 %v388, %v389
          %v391 = vrot.slane %v390, 1
          %v392 = vmin.f32 %v390, %v391
          %s393 = vtos %v392
          %v394 = vstv %s393
          %v395 = vsub.f32 %v383, %v394
          %v396 = vsel %vm377, %v395, -inf
          %397 = vmax.xlane.f32.xlu0 %v396
          %v398 = vpop.xlane.xlu0 %397
          %v399 = vrot.slane %v398, 4
          %v400 = vmax.f32 %v398, %v399
          %v401 = vrot.slane %v400, 2
          %v402 = vmax.f32 %v400, %v401
          %v403 = vrot.slane %v402, 1
          %v404 = vmax.f32 %v402, %v403
          %s405 = vtos %v404
          %v406 = vstv %s405
          %v407 = vadd.f32 %v406, 1e-07
          %v408 = vrcp.pop %v407
          %v409 = vmul.f32 %v395, %v408
          %v410 = vld [vmem:[#allocation8] sm:$0xff]
          %v411 = vld [vmem:[#allocation8 + $0x8] sm:$0xff]
          %v412 = vld [vmem:[#allocation8 + $0x10] sm:$0xff]
          %v413 = vld [vmem:[#allocation8 + $0x18] sm:$0xff]
          %v414 = vld [vmem:[#allocation8 + $0x20] sm:$0xff]
          %v415 = vld [vmem:[#allocation8 + $0x28] sm:$0xff]
          %v416 = vld [vmem:[#allocation8 + $0x30] sm:$0xff]
          %v417 = vld [vmem:[#allocation8 + $0x38] sm:$0xff]
          %v418 = vld [vmem:[#allocation8 + $0x40] sm:$0xff]
          %v419 = vld [vmem:[#allocation8 + $0x48] sm:$0xff]
          %v420 = vld [vmem:[#allocation8 + $0x50] sm:$0xff]
          %v421 = vld [vmem:[#allocation8 + $0x58] sm:$0xff]
          %v422 = vld [vmem:[#allocation8 + $0x60] sm:$0xff]
          %v423 = vld [vmem:[#allocation8 + $0x68] sm:$0xff]
          %v424 = vld [vmem:[#allocation8 + $0x70] sm:$0xff]
          %v425 = vld [vmem:[#allocation8 + $0x78] sm:$0xff]
          %v427 = vsel %vm263, %v409, 0
          %429 = vmatprep.subr.mxu0 %v411
          %430 = vmatpush1.msra.mxu0 %v410
          %431 = vmatprep.subr.mxu0 %v413
          %432 = vmatpush1.msra.mxu0 %v412
          %433 = vmatprep.subr.mxu0 %v415
          %434 = vmatpush1.msra.mxu0 %v414
          %435 = vmatprep.subr.mxu0 %v417
          %436 = vmatpush1.msra.mxu0 %v416
          %437 = vmatprep.subr.mxu0 %v419
          %438 = vmatpush1.msra.mxu0 %v418
          %439 = vmatprep.subr.mxu0 %v421
          %440 = vmatpush1.msra.mxu0 %v420
          %441 = vmatprep.subr.mxu0 %v423
          %442 = vmatpush1.msra.mxu0 %v422
          %443 = vmatprep.subr.mxu0 %v425
          %444 = vmatpush1.msra.mxu0 %v424
          %445 = vmatprep.subr.mxu0 0.0
          %446 = vmatpush1.msra.mxu0 0.0
          %447 = vmatprep.subr.mxu0 0.0
          %448 = vmatpush1.msra.mxu0 0.0
          %449 = vmatprep.subr.mxu0 0.0
          %450 = vmatpush1.msra.mxu0 0.0
          %451 = vmatprep.subr.mxu0 0.0
          %452 = vmatpush1.msra.mxu0 0.0
          %453 = vmatprep.subr.mxu0 0.0
          %454 = vmatpush1.msra.mxu0 0.0
          %455 = vmatprep.subr.mxu0 0.0
          %456 = vmatpush1.msra.mxu0 0.0
          %457 = vmatprep.subr.mxu0 0.0
          %458 = vmatpush1.msra.mxu0 0.0
          %459 = vmatprep.subr.mxu0 0.0
          %460 = vmatpush1.msra.mxu0 0.0
          %461 = vmatprep.subr.mxu0 0.0
          %462 = vmatpush1.msra.mxu0 0.0
          %463 = vmatprep.subr.mxu0 0.0
          %464 = vmatpush1.msra.mxu0 0.0
          %465 = vmatprep.subr.mxu0 0.0
          %466 = vmatpush1.msra.mxu0 0.0
          %467 = vmatprep.subr.mxu0 0.0
          %468 = vmatpush1.msra.mxu0 0.0
          %469 = vmatprep.subr.mxu0 0.0
          %470 = vmatpush1.msra.mxu0 0.0
          %471 = vmatprep.subr.mxu0 0.0
          %472 = vmatpush1.msra.mxu0 0.0
          %473 = vmatprep.subr.mxu0 0.0
          %474 = vmatpush1.msra.mxu0 0.0
          %475 = vmatprep.subr.mxu0 0.0
          %476 = vmatpush1.msra.mxu0 0.0
          %477 = vmatprep.subr.mxu0 0.0
          %478 = vmatpush1.msra.mxu0 0.0
          %479 = vmatprep.subr.mxu0 0.0
          %480 = vmatpush1.msra.mxu0 0.0
          %481 = vmatprep.subr.mxu0 0.0
          %482 = vmatpush1.msra.mxu0 0.0
          %483 = vmatprep.subr.mxu0 0.0
          %484 = vmatpush1.msra.mxu0 0.0
          %485 = vmatprep.subr.mxu0 0.0
          %486 = vmatpush1.msra.mxu0 0.0
          %487 = vmatprep.subr.mxu0 0.0
          %488 = vmatpush1.msra.mxu0 0.0
          %489 = vmatprep.subr.mxu0 0.0
          %490 = vmatpush1.msra.mxu0 0.0
          %491 = vmatprep.subr.mxu0 0.0
          %492 = vmatpush1.msra.mxu0 0.0
          %493 = vmatprep.mubr.f32.mxu0 0.0
          %494 = vmatmul.mubr.f32.gmra.mrb[0].mxu0 %v427
          %v495 = vpop.f32.mrb[0].mxu0
          %v496 = vadd.f32 0.0, %v495
          %v497 = vpop.f32.mrb[0].mxu0
          %v498 = vadd.f32 0.0, %v497
          %499 = vdwg.mxu0
          %vm500 = vcmask 1040384
          %v501 = vsel %vm500, %v496, inf
          %v502 = vsel %vm500, %v498, inf
          %v503 = vmin.f32 %v501, %v502
          %504 = vmin.xlane.f32.xlu0 %v503
          %v505 = vpop.xlane.xlu0 %504
          %v506 = vrot.slane %v505, 4
          %v507 = vmin.f32 %v505, %v506
          %v508 = vrot.slane %v507, 2
          %v509 = vmin.f32 %v507, %v508
          %v510 = vrot.slane %v509, 1
          %v511 = vmin.f32 %v509, %v510
          %s512 = vtos %v511
          %v513 = vstv %s512
          %v514 = vsub.f32 %v496, %v513
          %v515 = vsub.f32 %v498, %v513
          %v516 = vsel %vm500, %v514, -inf
          %v517 = vsel %vm500, %v515, -inf
          %v518 = vmax.f32 %v516, %v517
          %519 = vmax.xlane.f32.xlu0 %v518
          %v520 = vpop.xlane.xlu0 %519
          %v521 = vrot.slane %v520, 4
          %v522 = vmax.f32 %v520, %v521
          %v523 = vrot.slane %v522, 2
          %v524 = vmax.f32 %v522, %v523
          %v525 = vrot.slane %v524, 1
          %v526 = vmax.f32 %v524, %v525
          %s527 = vtos %v526
          %v528 = vstv %s527
          %v529 = vadd.f32 %v528, 1e-07
          %v530 = vrcp.pop %v529
          %v531 = vmul.f32 %v514, %v530
          %v532 = vmul.f32 %v515, %v530
          %v535 = vcombine.low %v531, %v532
          %v537 = vunpack.c.l.s4 1966171168
          %v538 = vunpack.c.0.s8 %v537
          %v539 = vlaneseq
          %v540 = vshrl.u32 %v539, 7
          %v541 = vsub.s32 %v538, %v540
          %v542 = vrot.slane %v535, %v541
          %v544 = vunpack.c.l.s4 1966171168
          %v545 = vunpack.c.0.s8 %v544
          %v546 = vlaneseq
          %v547 = vshrl.u32 %v546, 7
          %v548 = vsub.s32 %v545, %v547
          %v549 = vrot.slane %v542, %v548
          %v551 = vlaneseq
          %vm552 = vcmp.ge.s32.totalorder %v551, 0
          %vm553 = vcmp.lt.s32.totalorder %v551, 256
          %vm554 = vmand %vm552, %vm553
          %555 = vst.msk [vmem:[%s254] sm:$0x3] %vm554, %v549
        $region52: #{tpu_custom_call.1} parent=31 // pred_fallthru
          _
        %s556 = sand.u32 %s120, 1
        %s557 = scalar_lea.sflag [#allocation5], %s556
        %s558 = sand.u32 %s120, 1
        %s559 = smul.addr %s558, 2
        %s560 = scalar_lea.vmem [#allocation9], %s559
        // Predicated region
        $region53: #{tpu_custom_call.1} parent=31 // pred_check
          %p561 = pneg %p130
        $region54: #{tpu_custom_call.1} parent=31 // pred_check_branch
          %563 = sbr.rel (%p561) target = $region56
        $region55: #{tpu_custom_call.1} parent=31 // pred_region
          %s565 = ssub.s32 32, 32
          %566 = vsyncadd %s557, %s565
          %s567 = smul.addr %s27, 2
          %s568 = smul.addr %s567, 16
          %s569 = scalar_lea.hbm %s3, %s568
          %s571 = sshll.u32 %s560, 4
          %s572 = int_to_ptr.vmem [resolvable:$true] %s571
          %574 = dma.vmem_to_hbm [thread:$0]  %s572, 32, %s569, %s557
        $region56: #{tpu_custom_call.1} parent=31 // pred_fallthru
          _
      $region32: #{tpu_custom_call.1} parent=5 // pred_fallthru
        _
      %p575 = scmp.le.s32.totalorder 2, %s18
      // Predicated region
      $region57: #{tpu_custom_call.1} parent=5 // pred_check
        %p576 = pneg %p575
      $region58: #{tpu_custom_call.1} parent=5 // pred_check_branch
        %578 = sbr.rel (%p576) target = $region60
      $region59: #{tpu_custom_call.1} parent=5 // pred_region
        %s579 = ssub.s32 %s18, 2
        // Predicated region
        $region61: #{tpu_custom_call.1} parent=59 // pred_check
          %p580 = pneg %p136
        $region62: #{tpu_custom_call.1} parent=59 // pred_check_branch
          %582 = sbr.rel (%p580) target = $region64
        $region63: #{tpu_custom_call.1} parent=59 // pred_region
          %s583 = sand.u32 %s121, 1
          %s584 = scalar_lea.sflag [#allocation5], %s583
          %s585 = sand.u32 %s121, 1
          %s586 = smul.addr %s585, 2
          %s587 = scalar_lea.vmem [#allocation9], %s586
          %588 = dma.done %s584, 32
        $region64: #{tpu_custom_call.1} parent=59 // pred_fallthru
          _
      $region60: #{tpu_custom_call.1} parent=5 // pred_fallthru
        _
    $region6: #{tpu_custom_call.1} parent=1 // loop_footer
      %s22 = sadd.s32 1, %s18
    $region7: #{tpu_custom_call.1} parent=1 // loop_footer_branch
      %17 = sbr.rel target = $region3
    $region8: #{tpu_custom_call.1} parent=1 // loop_exit
      _
    %589 = vsyncpa [#allocation4], 1
    %s590 = scalar_lea.sflag [#allocation4], 1
    %591 = vsyncpa %s590, 1
    %592 = vsyncpa [#allocation7], 1
    %s593 = scalar_lea.sflag [#allocation7], 1
    %594 = vsyncpa %s593, 1
    %595 = vsyncpa [#allocation5], 1
    %s596 = scalar_lea.sflag [#allocation5], 1
    %597 = vsyncpa %s596, 1

</llo_original>
